<compile_context>
chip_gen: v7x
topology: tpu7x:2x2x1
jax: 0.10.0
libtpu: 0.0.40
codegen_flags: <defaults>
</compile_context>

<pallas_src>
import numpy as np
import jax
import jax.numpy as jnp
from jax.experimental import pallas as pl
from jax.experimental.pallas import tpu as pltpu


# ---------------------------------------------------------------------------
# db4 decomposition filters (pywt convention: dec_lo = reversed scaling filter,
# dec_hi = QMF).  Filter length L = 8.
# ---------------------------------------------------------------------------
_DB4_DEC_LO = np.array([
    -0.010597401784997278, 0.032883011666982945, 0.030841381835986965,
    -0.18703481171888114, -0.02798376941698385, 0.6308807679295904,
    0.7148465705525415, 0.23037781330885523], dtype=np.float64)
_DB4_DEC_HI = np.array([
    -0.23037781330885523, 0.7148465705525415, -0.6308807679295904,
    -0.02798376941698385, 0.18703481171888114, 0.030841381835986965,
    -0.032883011666982945, -0.010597401784997278], dtype=np.float64)


def _round_up(v, m):
    return ((v + m - 1) // m) * m


def _dwt_analysis_matrices(n, dec_lo, dec_hi):
    """Matrices D (M x n) s.t. D @ x == pywt single-level DWT (mode='symmetric').

    pywt convention: out[o] = sum_k filt[k] * ext[2*o + 1 - k], half-sample
    symmetric extension, M = (n + L - 1) // 2.
    """
    L = len(dec_lo)
    m = (n + L - 1) // 2

    def reflect(i):
        while i < 0 or i >= n:
            if i < 0:
                i = -i - 1
            if i >= n:
                i = 2 * n - 1 - i
        return i

    d_lo = np.zeros((m, n), np.float64)
    d_hi = np.zeros((m, n), np.float64)
    for o in range(m):
        for k in range(L):
            j = reflect(2 * o + 1 - k)
            d_lo[o, j] += dec_lo[k]
            d_hi[o, j] += dec_hi[k]
    return d_lo, d_hi


def _bilinear_matrix(out_size, in_size):
    """R (out x in) s.t. R @ x == F.interpolate(x, mode='bilinear', align_corners=False)."""
    r = np.zeros((out_size, in_size), np.float64)
    scale = in_size / out_size
    for i in range(out_size):
        src = max(scale * (i + 0.5) - 0.5, 0.0)
        i0 = min(int(np.floor(src)), in_size - 1)
        i1 = min(i0 + 1, in_size - 1)
        frac = src - i0
        r[i, i0] += 1.0 - frac
        r[i, i1] += frac
    return r


def _build_operands(H, W, images_per_tile):
    """Constant, (8,128)-aligned GEMM operands (host-side numpy, trace-time).

    All padding is with exact zeros, which contribute nothing to any GEMM or to
    the |.|-sum, so the result is bit-for-bit the unpadded math.
    """
    dlo_h, dhi_h = _dwt_analysis_matrices(H, _DB4_DEC_LO, _DB4_DEC_HI)   # (Mr, H)
    dlo_w, dhi_w = _dwt_analysis_matrices(W, _DB4_DEC_LO, _DB4_DEC_HI)   # (Mc, W)
    mr, mc = dlo_h.shape[0], dlo_w.shape[0]

    # Pad each sub-band to a sublane-tile multiple; prefer a lane-128-aligned
    # highpass-band lane offset (ipt * mc_pad % 128 == 0) so the detail-band
    # slices in the kernel never cut a vreg tile.
    mr_pad = _round_up(mr, 8)
    mc_pad = _round_up(mc, 8)
    while (images_per_tile * mc_pad) % 128 != 0 and mc_pad < _round_up(mc, 128):
        mc_pad += 8

    # Row (H-axis) analysis: [lowpass ; highpass], each band mr_pad sublanes.
    a_pad = np.zeros((2 * mr_pad, H), np.float64)                        # (32, H)
    a_pad[:mr] = dlo_h
    a_pad[mr_pad:mr_pad + mr] = dhi_h

    # Per-TILE block-diagonal column (W-axis) analysis, lanes -> [lo | hi],
    # shared by every grid step (constant size regardless of total batch).
    lt = images_per_tile * W                                             # 128 lanes
    half = images_per_tile * mc_pad                                      # 128 lanes
    bdq = np.zeros((lt, 2 * half), np.float64)                           # (128, 256)
    for n in range(images_per_tile):
        bdq[n * W:(n + 1) * W, n * mc_pad:n * mc_pad + mc] = dlo_w.T
        bdq[n * W:(n + 1) * W, half + n * mc_pad:half + n * mc_pad + mc] = dhi_w.T

    # Bilinear row upsampling (padded columns only ever meet zero freq rows).
    rh = np.zeros((H, mr_pad), np.float64)                               # (H, 16)
    rh[:, :mr] = _bilinear_matrix(H, mr)

    # Per-TILE block-diagonal bilinear column upsampling.
    rw = _bilinear_matrix(W, mc)                                         # (W, Mc)
    bdr = np.zeros((half, lt), np.float64)                               # (128, 128)
    for n in range(images_per_tile):
        bdr[n * mc_pad:n * mc_pad + mc, n * W:(n + 1) * W] = rw.T

    f32 = lambda arr: jnp.asarray(arr, dtype=jnp.float32)
    return f32(a_pad), f32(bdq), f32(rh), f32(bdr)


# ---------------------------------------------------------------------------
# Pallas kernel: four 2-D GEMMs + one elementwise |.|-combine per batch tile.
# ---------------------------------------------------------------------------
def _wavelet_kernel(x_ref, a_ref, bdq_ref, rh_ref, bdr_ref, o_ref):
    # Shapes for the shipped size (B=2, C=4, H=W=16, db4 -> Mr=Mc=11, tile = 8 imgs):
    #   x_ref  : (H, 128)   = (16, 128)   tile's images packed on the lane axis
    #   a_ref  : (32, H)    = (32, 16)    [lowpass ; highpass] row analysis (padded)
    #   bdq_ref: (128, 256)               per-tile block-diag column analysis [lo | hi]
    #   rh_ref : (H, 16)    = (16, 16)    bilinear row upsampling (padded)
    #   bdr_ref: (128, 128)               per-tile block-diag bilinear column upsampling
    #   o_ref  : (H, 128)   = (16, 128)   lane-dense output (unmasked stores)
    mr_pad = a_ref.shape[0] // 2      # 16  -> highpass-H rows start at sublane 16
    half = bdr_ref.shape[0]           # 128 -> highpass-W lanes start at lane 128

    # 1) W-axis DWT analysis for all tile images at once (K = 128, full MXU depth).
    s1 = jnp.dot(x_ref[...], bdq_ref[...], preferred_element_type=jnp.float32)   # (H, 256)
    # 2) H-axis DWT analysis (reassociated: A @ (X @ BDQ)).
    t2 = jnp.dot(a_ref[...], s1, preferred_element_type=jnp.float32)             # (32, 256)
    # 3) freq = |LH| + |HL| + |HH| — every slice boundary is vreg-tile aligned.
    freq = (jnp.abs(t2[mr_pad:, :half])        # detail-H / approx-W
            + jnp.abs(t2[:mr_pad, half:])      # approx-H / detail-W
            + jnp.abs(t2[mr_pad:, half:]))     # detail-H / detail-W            # (16, 128)
    # 4) bilinear upsample lanes back to W (block-diagonal, K = 128) ...
    u = jnp.dot(freq, bdr_ref[...], preferred_element_type=jnp.float32)          # (16, 128)
    # 5) ... and rows back to H, then one lane-dense store.
    o_ref[...] = jnp.dot(rh_ref[...], u,
                         preferred_element_type=jnp.float32).astype(o_ref.dtype)


@jax.jit
def wavelet_domain_feature(x):
    """Forward pass of WaveletDomainFeature.  Input/Output: NCHW float32."""
    B, C, H, W = x.shape
    N = B * C

    # Tile the batch/lane axis: 128 lanes (= 8 images at W=16) per grid step.
    if W <= 128 and 128 % W == 0 and N % (128 // W) == 0:
        images_per_tile = 128 // W
    else:
        images_per_tile = N        # fallback: single full-width tile
    n_tiles = N // images_per_tile
    lane_tile = images_per_tile * W

    a_pad, bdq, rh, bdr = _build_operands(H, W, images_per_tile)

    x32 = x.astype(jnp.float32)
    # Layout plumbing: (B,C,H,W) -> (H, N*W) so images ride the lane axis.
    # allow_input_fusion lets XLA fold this transpose into the operand DMA.
    xt = jnp.transpose(x32.reshape(N, H, W), (1, 0, 2)).reshape(H, N * W)

    out = pl.pallas_call(
        _wavelet_kernel,
        out_shape=jax.ShapeDtypeStruct((H, N * W), jnp.float32),
        grid=(n_tiles,),
        in_specs=[
            pl.BlockSpec((H, lane_tile), lambda t: (0, t)),     # per-tile image slab
            pl.BlockSpec(a_pad.shape, lambda t: (0, 0)),        # shared across tiles
            pl.BlockSpec(bdq.shape, lambda t: (0, 0)),          # shared across tiles
            pl.BlockSpec(rh.shape, lambda t: (0, 0)),           # shared across tiles
            pl.BlockSpec(bdr.shape, lambda t: (0, 0)),          # shared across tiles
        ],
        out_specs=pl.BlockSpec((H, lane_tile), lambda t: (0, t)),
        compiler_params=pltpu.CompilerParams(
            dimension_semantics=("parallel",),
            allow_input_fusion=[True, False, False, False, False],
        ),
    )(xt, a_pad, bdq, rh, bdr)

    # (H, N*W) -> (B, C, H, W)
    # TODO(synk): at very large H*W, fold this output transpose into the consumer
    # (or emit NCHW directly from a sublane-batched variant) to avoid the extra
    # HBM round-trip; at this size it is noise.
    return jnp.transpose(out.reshape(H, N, W), (1, 0, 2)).reshape(B, C, H, W)


# ---------------------------------------------------------------------------
# Independent pure-JAX reference (elementwise only, no matmuls) mirroring the
# PyTorch module: pywt-style db4 dwt2 (symmetric mode) + torch bilinear resize.
# ---------------------------------------------------------------------------
def _dwt1d_last(a, filt):
    L = len(filt)
    n = a.shape[-1]
    m = (n + L - 1) // 2
    pad = [(0, 0)] * (a.ndim - 1) + [(L - 1, L - 1)]
    ext = jnp.pad(a, pad, mode='symmetric')
    out = jnp.zeros(a.shape[:-1] + (m,), dtype=a.dtype)
    for k in range(L):
        start = L - k  # ext index of original position (2*o + 1 - k) at o = 0
        out = out + float(filt[k]) * ext[..., start:start + 2 * m:2]
    return out


def _dwt_detail_map(a):
    swap = lambda t: jnp.swapaxes(t, 1, 2)
    lo_w = _dwt1d_last(a, _DB4_DEC_LO)
    hi_w = _dwt1d_last(a, _DB4_DEC_HI)
    da = swap(_dwt1d_last(swap(lo_w), _DB4_DEC_HI))   # LH
    ad = swap(_dwt1d_last(swap(hi_w), _DB4_DEC_LO))   # HL
    dd = swap(_dwt1d_last(swap(hi_w), _DB4_DEC_HI))   # HH
    return jnp.abs(da) + jnp.abs(ad) + jnp.abs(dd)


def _resize_bilinear_axis(t, out_size, axis):
    in_size = t.shape[axis]
    scale = in_size / out_size
    src = np.maximum(scale * (np.arange(out_size) + 0.5) - 0.5, 0.0)
    i0 = np.minimum(np.floor(src).astype(np.int64), in_size - 1)
    i1 = np.minimum(i0 + 1, in_size - 1)
    w1 = (src - i0).astype(np.float32)
    t0 = jnp.take(t, jnp.asarray(i0), axis=axis)
    t1 = jnp.take(t, jnp.asarray(i1), axis=axis)
    shape = [1] * t.ndim
    shape[axis] = out_size
    w1 = jnp.asarray(w1).reshape(shape)
    return t0 * (1.0 - w1) + t1 * w1


def wavelet_domain_feature_reference(x):
    B, C, H, W = x.shape
    a = x.reshape(B * C, H, W).astype(jnp.float32)
    freq = _dwt_detail_map(a)
    up = _resize_bilinear_axis(freq, H, axis=1)
    up = _resize_bilinear_axis(up, W, axis=2)
    return up.reshape(B, C, H, W)


if __name__ == "__main__":
    B, C, H, W = 2, 4, 16, 16
    key = jax.random.PRNGKey(0)
    x = jax.random.normal(key, (B, C, H, W), dtype=jnp.float32)

    out = wavelet_domain_feature(x)
    out = jax.block_until_ready(out)

    ref = wavelet_domain_feature_reference(x)
    ref = jax.block_until_ready(ref)

    assert out.shape == (B, C, H, W)
    assert jnp.allclose(out, ref, rtol=2e-3, atol=2e-3), \
        float(jnp.max(jnp.abs(out - ref)))

    print("KERNEL_OK")
</pallas_src>

<mosaic_0001>
module attributes {stable_mosaic.version = 11 : i64} {
  func.func @_wavelet_kernel(%arg0: i32, %arg1: memref<16x128xf32, #tpu.memory_space<vmem>>, %arg2: memref<32x16xf32, #tpu.memory_space<vmem>>, %arg3: memref<128x256xf32, #tpu.memory_space<vmem>>, %arg4: memref<16x16xf32, #tpu.memory_space<vmem>>, %arg5: memref<128x128xf32, #tpu.memory_space<vmem>>, %arg6: memref<16x128xf32, #tpu.memory_space<vmem>>) attributes {dimension_semantics = [#tpu.dimension_semantics<parallel>], iteration_bounds = array<i64: 1>, scalar_prefetch = 0 : i64, scratch_operands = 0 : i64, tpu.core_type = #tpu.core_type<tc>, window_params = [{transform_indices = @transform_0, window_bounds = array<i64: 16, 128>}, {pipeline_mode = #tpu.pipeline_mode<synchronous>, transform_indices = @transform_1, window_bounds = array<i64: 32, 16>}, {pipeline_mode = #tpu.pipeline_mode<synchronous>, transform_indices = @transform_2, window_bounds = array<i64: 128, 256>}, {pipeline_mode = #tpu.pipeline_mode<synchronous>, transform_indices = @transform_3, window_bounds = array<i64: 16, 16>}, {pipeline_mode = #tpu.pipeline_mode<synchronous>, transform_indices = @transform_4, window_bounds = array<i64: 128, 128>}, {transform_indices = @transform_5, window_bounds = array<i64: 16, 128>}]} {
    %c0 = arith.constant 0 : index
    %c0_0 = arith.constant 0 : index
    %0 = vector.load %arg1[%c0, %c0_0] : memref<16x128xf32, #tpu.memory_space<vmem>>, vector<16x128xf32>
    %c0_1 = arith.constant 0 : index
    %c0_2 = arith.constant 0 : index
    %1 = vector.load %arg3[%c0_1, %c0_2] : memref<128x256xf32, #tpu.memory_space<vmem>>, vector<128x256xf32>
    %cst = arith.constant dense<0.000000e+00> : vector<16x256xf32>
    %2 = tpu.matmul %0, %1, %cst {dimension_numbers = #tpu.dot_dimension_numbers<[1], [0], [0], [1], [0, 0, 1, 1], [], []>} : vector<16x128xf32>, vector<128x256xf32>, vector<16x256xf32> -> vector<16x256xf32>
    %c0_3 = arith.constant 0 : index
    %c0_4 = arith.constant 0 : index
    %3 = vector.load %arg2[%c0_3, %c0_4] : memref<32x16xf32, #tpu.memory_space<vmem>>, vector<32x16xf32>
    %cst_5 = arith.constant dense<0.000000e+00> : vector<32x256xf32>
    %4 = tpu.matmul %3, %2, %cst_5 {dimension_numbers = #tpu.dot_dimension_numbers<[1], [0], [0], [1], [0, 0, 1, 1], [], []>} : vector<32x16xf32>, vector<16x256xf32>, vector<32x256xf32> -> vector<32x256xf32>
    %5 = vector.extract_strided_slice %4 {offsets = [16, 0], sizes = [16, 128], strides = [1, 1]} : vector<32x256xf32> to vector<16x128xf32>
    %6 = math.absf %5 : vector<16x128xf32>
    %7 = vector.extract_strided_slice %4 {offsets = [0, 128], sizes = [16, 128], strides = [1, 1]} : vector<32x256xf32> to vector<16x128xf32>
    %8 = math.absf %7 : vector<16x128xf32>
    %9 = arith.addf %6, %8 : vector<16x128xf32>
    %10 = vector.extract_strided_slice %4 {offsets = [16, 128], sizes = [16, 128], strides = [1, 1]} : vector<32x256xf32> to vector<16x128xf32>
    %11 = math.absf %10 : vector<16x128xf32>
    %12 = arith.addf %9, %11 : vector<16x128xf32>
    %c0_6 = arith.constant 0 : index
    %c0_7 = arith.constant 0 : index
    %13 = vector.load %arg5[%c0_6, %c0_7] : memref<128x128xf32, #tpu.memory_space<vmem>>, vector<128x128xf32>
    %cst_8 = arith.constant dense<0.000000e+00> : vector<16x128xf32>
    %14 = tpu.matmul %12, %13, %cst_8 {dimension_numbers = #tpu.dot_dimension_numbers<[1], [0], [0], [1], [0, 0, 1, 1], [], []>} : vector<16x128xf32>, vector<128x128xf32>, vector<16x128xf32> -> vector<16x128xf32>
    %c0_9 = arith.constant 0 : index
    %c0_10 = arith.constant 0 : index
    %15 = vector.load %arg4[%c0_9, %c0_10] : memref<16x16xf32, #tpu.memory_space<vmem>>, vector<16x16xf32>
    %cst_11 = arith.constant dense<0.000000e+00> : vector<16x128xf32>
    %16 = tpu.matmul %15, %14, %cst_11 {dimension_numbers = #tpu.dot_dimension_numbers<[1], [0], [0], [1], [0, 0, 1, 1], [], []>} : vector<16x16xf32>, vector<16x128xf32>, vector<16x128xf32> -> vector<16x128xf32>
    %c0_12 = arith.constant 0 : index
    %c0_13 = arith.constant 0 : index
    %17 = vector.load %arg6[%c0_12, %c0_13] : memref<16x128xf32, #tpu.memory_space<vmem>>, vector<16x128xf32>
    tpu.vector_store %arg6[%c0_12, %c0_13], %16 {strides = array<i32>} : memref<16x128xf32, #tpu.memory_space<vmem>>, vector<16x128xf32>,
    return
  }
  func.func @transform_0(%arg0: i32) -> (i32, i32) {
    %c0_i32 = arith.constant 0 : i32
    %c0_i32_0 = arith.constant 0 : i32
    return %c0_i32, %arg0 : i32, i32
  }
  func.func @transform_1(%arg0: i32) -> (i32, i32) {
    %c0_i32 = arith.constant 0 : i32
    %c0_i32_0 = arith.constant 0 : i32
    %c0_i32_1 = arith.constant 0 : i32
    return %c0_i32, %c0_i32_0 : i32, i32
  }
  func.func @transform_2(%arg0: i32) -> (i32, i32) {
    %c0_i32 = arith.constant 0 : i32
    %c0_i32_0 = arith.constant 0 : i32
    %c0_i32_1 = arith.constant 0 : i32
    return %c0_i32, %c0_i32_0 : i32, i32
  }
  func.func @transform_3(%arg0: i32) -> (i32, i32) {
    %c0_i32 = arith.constant 0 : i32
    %c0_i32_0 = arith.constant 0 : i32
    %c0_i32_1 = arith.constant 0 : i32
    return %c0_i32, %c0_i32_0 : i32, i32
  }
  func.func @transform_4(%arg0: i32) -> (i32, i32) {
    %c0_i32 = arith.constant 0 : i32
    %c0_i32_0 = arith.constant 0 : i32
    %c0_i32_1 = arith.constant 0 : i32
    return %c0_i32, %c0_i32_0 : i32, i32
  }
  func.func @transform_5(%arg0: i32) -> (i32, i32) {
    %c0_i32 = arith.constant 0 : i32
    %c0_i32_0 = arith.constant 0 : i32
    return %c0_i32, %arg0 : i32, i32
  }
}

</mosaic_0001>

<llo_original>
// kernel: wavelet_domain_feature.1
$region0: #{wavelet_domain_feature.1}
  #allocation0 [shape = 'u32[]', space=smem, size = 0x4, offset = 0x4, fixed_abs, tag = 'smem constant byte address 0x4 - core index']
  #allocation1 [shape = 'u32[144,128]{1,0:T(1,128)}', space=vmem, size = 0x12000, scoped, tag = 'internal scratch']
  %s0 = inlined_call_operand.vmem [shape: f32[16,128], index: 0, kind: input, shape index: {}]
  %s1 = inlined_call_operand.hbm [shape: f32[32,16], index: 1, kind: input, shape index: {}]
  %s2 = inlined_call_operand.vmem [shape: f32[128,256], index: 2, kind: input, shape index: {}]
  %s3 = inlined_call_operand.vmem [shape: f32[16,16], index: 3, kind: input, shape index: {}]
  %s4 = inlined_call_operand.vmem [shape: f32[128,128], index: 4, kind: input, shape index: {}]
  %s5 = inlined_call_operand.vmem [shape: f32[16,128], index: 5, kind: output, shape index: {}]
  %s6 = sld [smem:[#allocation0]]
  $region34: #{wavelet_domain_feature.1} parent=0
    _
  %s8 = ssub.s32 1, %s6
  %s9 = scalar_select 0, %s8, %s6
  $region1: #{wavelet_domain_feature.1} parent=0
    #allocation2 [shape = 'u8[16384]{0}', space=vmem, size = 0x4000, scoped, tag = 'input window, operand 1, single buffered']
    #allocation3 [shape = 's32[1]{0}', space=sflag, size = 0x4, scoped, tag = 'scoped memory for wavelet_domain_feature.1']
    %10 = vsyncpa [#allocation3], 0
    // Predicated region
    $region2: #{wavelet_domain_feature.1} parent=1 // pred_check
      _
    $region3: #{wavelet_domain_feature.1} parent=1 // pred_check_branch
      %12 = sbr.rel (0) target = $region5
    $region4: #{wavelet_domain_feature.1} parent=1 // pred_region
      _
    $region5: #{wavelet_domain_feature.1} parent=1 // pred_fallthru
      _
    // Predicated region
    $region6: #{wavelet_domain_feature.1} parent=1 // pred_check
      _
    $region7: #{wavelet_domain_feature.1} parent=1 // pred_check_branch
      %14 = sbr.rel (0) target = $region9
    $region8: #{wavelet_domain_feature.1} parent=1 // pred_region
      %s16 = ssub.s32 512, 512
      %17 = vsyncadd [#allocation3], %s16
      %s18 = sshll.u32 [#allocation2], 4
      %s19 = int_to_ptr.vmem [resolvable:$true] %s18
      %24 = dma.hbm_to_vmem [thread:$0]  %s1, 512, %s19, [#allocation3], 128, 128, 8
    $region9: #{wavelet_domain_feature.1} parent=1 // pred_fallthru
      _
    // Predicated region
    $region10: #{wavelet_domain_feature.1} parent=1 // pred_check
      _
    $region11: #{wavelet_domain_feature.1} parent=1 // pred_check_branch
      %26 = sbr.rel (0) target = $region13
    $region12: #{wavelet_domain_feature.1} parent=1 // pred_region
      _
    $region13: #{wavelet_domain_feature.1} parent=1 // pred_fallthru
      _
    // Predicated region
    $region14: #{wavelet_domain_feature.1} parent=1 // pred_check
      _
    $region15: #{wavelet_domain_feature.1} parent=1 // pred_check_branch
      %28 = sbr.rel (0) target = $region17
    $region16: #{wavelet_domain_feature.1} parent=1 // pred_region
      _
    $region17: #{wavelet_domain_feature.1} parent=1 // pred_fallthru
      _
    // Predicated region
    $region18: #{wavelet_domain_feature.1} parent=1 // pred_check
      _
    $region19: #{wavelet_domain_feature.1} parent=1 // pred_check_branch
      %30 = sbr.rel (0) target = $region21
    $region20: #{wavelet_domain_feature.1} parent=1 // pred_region
      _
    $region21: #{wavelet_domain_feature.1} parent=1 // pred_fallthru
      _
    // Predicated region
    $region22: #{wavelet_domain_feature.1} parent=1 // pred_check
      _
    $region23: #{wavelet_domain_feature.1} parent=1 // pred_check_branch
      %32 = sbr.rel (0) target = $region25
    $region24: #{wavelet_domain_feature.1} parent=1 // pred_region
      %33 = dma.done [#allocation3], 512
    $region25: #{wavelet_domain_feature.1} parent=1 // pred_fallthru
      _
    %v34 = vld [vmem:[%s0] sm:$0xff]
    %v35 = vld [vmem:[%s0 + $0x8] sm:$0xff]
    %v36 = vld [vmem:[%s2] sm:$0xff]
    %v37 = vld [vmem:[%s2 + $0x8] sm:$0xff]
    %v38 = vld [vmem:[%s2 + $0x10] sm:$0xff]
    %v39 = vld [vmem:[%s2 + $0x18] sm:$0xff]
    %v40 = vld [vmem:[%s2 + $0x20] sm:$0xff]
    %v41 = vld [vmem:[%s2 + $0x28] sm:$0xff]
    %v42 = vld [vmem:[%s2 + $0x30] sm:$0xff]
    %v43 = vld [vmem:[%s2 + $0x38] sm:$0xff]
    %v44 = vld [vmem:[%s2 + $0x40] sm:$0xff]
    %v45 = vld [vmem:[%s2 + $0x48] sm:$0xff]
    %v46 = vld [vmem:[%s2 + $0x50] sm:$0xff]
    %v47 = vld [vmem:[%s2 + $0x58] sm:$0xff]
    %v48 = vld [vmem:[%s2 + $0x60] sm:$0xff]
    %v49 = vld [vmem:[%s2 + $0x68] sm:$0xff]
    %v50 = vld [vmem:[%s2 + $0x70] sm:$0xff]
    %v51 = vld [vmem:[%s2 + $0x78] sm:$0xff]
    %v52 = vld [vmem:[%s2 + $0x80] sm:$0xff]
    %v53 = vld [vmem:[%s2 + $0x88] sm:$0xff]
    %v54 = vld [vmem:[%s2 + $0x90] sm:$0xff]
    %v55 = vld [vmem:[%s2 + $0x98] sm:$0xff]
    %v56 = vld [vmem:[%s2 + $0xa0] sm:$0xff]
    %v57 = vld [vmem:[%s2 + $0xa8] sm:$0xff]
    %v58 = vld [vmem:[%s2 + $0xb0] sm:$0xff]
    %v59 = vld [vmem:[%s2 + $0xb8] sm:$0xff]
    %v60 = vld [vmem:[%s2 + $0xc0] sm:$0xff]
    %v61 = vld [vmem:[%s2 + $0xc8] sm:$0xff]
    %v62 = vld [vmem:[%s2 + $0xd0] sm:$0xff]
    %v63 = vld [vmem:[%s2 + $0xd8] sm:$0xff]
    %v64 = vld [vmem:[%s2 + $0xe0] sm:$0xff]
    %v65 = vld [vmem:[%s2 + $0xe8] sm:$0xff]
    %v66 = vld [vmem:[%s2 + $0xf0] sm:$0xff]
    %v67 = vld [vmem:[%s2 + $0xf8] sm:$0xff]
    %68 = vmatprep.subr.mxu0 %v37
    %69 = vmatpush1.msra.mxu0 %v36
    %70 = vmatprep.subr.mxu0 %v39
    %71 = vmatpush1.msra.mxu0 %v38
    %72 = vmatprep.subr.mxu0 %v41
    %73 = vmatpush1.msra.mxu0 %v40
    %74 = vmatprep.subr.mxu0 %v43
    %75 = vmatpush1.msra.mxu0 %v42
    %76 = vmatprep.subr.mxu0 %v45
    %77 = vmatpush1.msra.mxu0 %v44
    %78 = vmatprep.subr.mxu0 %v47
    %79 = vmatpush1.msra.mxu0 %v46
    %80 = vmatprep.subr.mxu0 %v49
    %81 = vmatpush1.msra.mxu0 %v48
    %82 = vmatprep.subr.mxu0 %v51
    %83 = vmatpush1.msra.mxu0 %v50
    %84 = vmatprep.subr.mxu0 %v53
    %85 = vmatpush1.msra.mxu0 %v52
    %86 = vmatprep.subr.mxu0 %v55
    %87 = vmatpush1.msra.mxu0 %v54
    %88 = vmatprep.subr.mxu0 %v57
    %89 = vmatpush1.msra.mxu0 %v56
    %90 = vmatprep.subr.mxu0 %v59
    %91 = vmatpush1.msra.mxu0 %v58
    %92 = vmatprep.subr.mxu0 %v61
    %93 = vmatpush1.msra.mxu0 %v60
    %94 = vmatprep.subr.mxu0 %v63
    %95 = vmatpush1.msra.mxu0 %v62
    %96 = vmatprep.subr.mxu0 %v65
    %97 = vmatpush1.msra.mxu0 %v64
    %98 = vmatprep.subr.mxu0 %v67
    %99 = vmatpush1.msra.mxu0 %v66
    %100 = vmatprep.subr.mxu0 0.0
    %101 = vmatpush1.msra.mxu0 0.0
    %102 = vmatprep.subr.mxu0 0.0
    %103 = vmatpush1.msra.mxu0 0.0
    %104 = vmatprep.subr.mxu0 0.0
    %105 = vmatpush1.msra.mxu0 0.0
    %106 = vmatprep.subr.mxu0 0.0
    %107 = vmatpush1.msra.mxu0 0.0
    %108 = vmatprep.subr.mxu0 0.0
    %109 = vmatpush1.msra.mxu0 0.0
    %110 = vmatprep.subr.mxu0 0.0
    %111 = vmatpush1.msra.mxu0 0.0
    %112 = vmatprep.subr.mxu0 0.0
    %113 = vmatpush1.msra.mxu0 0.0
    %114 = vmatprep.subr.mxu0 0.0
    %115 = vmatpush1.msra.mxu0 0.0
    %116 = vmatprep.subr.mxu0 0.0
    %117 = vmatpush1.msra.mxu0 0.0
    %118 = vmatprep.subr.mxu0 0.0
    %119 = vmatpush1.msra.mxu0 0.0
    %120 = vmatprep.subr.mxu0 0.0
    %121 = vmatpush1.msra.mxu0 0.0
    %122 = vmatprep.subr.mxu0 0.0
    %123 = vmatpush1.msra.mxu0 0.0
    %124 = vmatprep.subr.mxu0 0.0
    %125 = vmatpush1.msra.mxu0 0.0
    %126 = vmatprep.subr.mxu0 0.0
    %127 = vmatpush1.msra.mxu0 0.0
    %128 = vmatprep.subr.mxu0 0.0
    %129 = vmatpush1.msra.mxu0 0.0
    %130 = vmatprep.subr.mxu0 0.0
    %131 = vmatpush1.msra.mxu0 0.0
    %132 = vmatprep.mubr.f32.mxu0 0.0
    %133 = vmatmul.mubr.f32.gmra.mrb[0].mxu0 %v34
    %v134 = vpop.f32.mrb[0].mxu0
    %v135 = vadd.f32 0.0, %v134
    %v136 = vpop.f32.mrb[0].mxu0
    %v137 = vadd.f32 0.0, %v136
    %138 = vmatprep.mubr.f32.mxu0 0.0
    %139 = vmatmul.mubr.f32.gmra.mrb[0].mxu0 %v35
    %v140 = vpop.f32.mrb[0].mxu0
    %v141 = vadd.f32 0.0, %v140
    %v142 = vpop.f32.mrb[0].mxu0
    %v143 = vadd.f32 0.0, %v142
    %144 = vdwg.mxu0
    %v145 = vld [vmem:[#allocation2] sm:$0xff]
    %v146 = vld [vmem:[#allocation2 + $0x8] sm:$0xff]
    %v147 = vld [vmem:[#allocation2 + $0x10] sm:$0xff]
    %v148 = vld [vmem:[#allocation2 + $0x18] sm:$0xff]
    %vm149 = vcmask 130048
    %v151 = vsel %vm149, %v145, 0
    %v154 = vsel %vm149, %v146, 0
    %v157 = vsel %vm149, %v147, 0
    %v160 = vsel %vm149, %v148, 0
    %162 = vmatprep.subr.mxu0 %v137
    %163 = vmatpush1.msra.mxu0 %v135
    %164 = vmatprep.subr.mxu0 %v143
    %165 = vmatpush1.msra.mxu0 %v141
    %166 = vmatprep.subr.mxu0 0.0
    %167 = vmatpush1.msra.mxu0 0.0
    %168 = vmatprep.subr.mxu0 0.0
    %169 = vmatpush1.msra.mxu0 0.0
    %170 = vmatprep.subr.mxu0 0.0
    %171 = vmatpush1.msra.mxu0 0.0
    %172 = vmatprep.subr.mxu0 0.0
    %173 = vmatpush1.msra.mxu0 0.0
    %174 = vmatprep.subr.mxu0 0.0
    %175 = vmatpush1.msra.mxu0 0.0
    %176 = vmatprep.subr.mxu0 0.0
    %177 = vmatpush1.msra.mxu0 0.0
    %178 = vmatprep.subr.mxu0 0.0
    %179 = vmatpush1.msra.mxu0 0.0
    %180 = vmatprep.subr.mxu0 0.0
    %181 = vmatpush1.msra.mxu0 0.0
    %182 = vmatprep.subr.mxu0 0.0
    %183 = vmatpush1.msra.mxu0 0.0
    %184 = vmatprep.subr.mxu0 0.0
    %185 = vmatpush1.msra.mxu0 0.0
    %186 = vmatprep.subr.mxu0 0.0
    %187 = vmatpush1.msra.mxu0 0.0
    %188 = vmatprep.subr.mxu0 0.0
    %189 = vmatpush1.msra.mxu0 0.0
    %190 = vmatprep.subr.mxu0 0.0
    %191 = vmatpush1.msra.mxu0 0.0
    %192 = vmatprep.subr.mxu0 0.0
    %193 = vmatpush1.msra.mxu0 0.0
    %194 = vmatprep.subr.mxu0 0.0
    %195 = vmatpush1.msra.mxu0 0.0
    %196 = vmatprep.subr.mxu0 0.0
    %197 = vmatpush1.msra.mxu0 0.0
    %198 = vmatprep.subr.mxu0 0.0
    %199 = vmatpush1.msra.mxu0 0.0
    %200 = vmatprep.subr.mxu0 0.0
    %201 = vmatpush1.msra.mxu0 0.0
    %202 = vmatprep.subr.mxu0 0.0
    %203 = vmatpush1.msra.mxu0 0.0
    %204 = vmatprep.subr.mxu0 0.0
    %205 = vmatpush1.msra.mxu0 0.0
    %206 = vmatprep.subr.mxu0 0.0
    %207 = vmatpush1.msra.mxu0 0.0
    %208 = vmatprep.subr.mxu0 0.0
    %209 = vmatpush1.msra.mxu0 0.0
    %210 = vmatprep.subr.mxu0 0.0
    %211 = vmatpush1.msra.mxu0 0.0
    %212 = vmatprep.subr.mxu0 0.0
    %213 = vmatpush1.msra.mxu0 0.0
    %214 = vmatprep.subr.mxu0 0.0
    %215 = vmatpush1.msra.mxu0 0.0
    %216 = vmatprep.subr.mxu0 0.0
    %217 = vmatpush1.msra.mxu0 0.0
    %218 = vmatprep.subr.mxu0 0.0
    %219 = vmatpush1.msra.mxu0 0.0
    %220 = vmatprep.subr.mxu0 0.0
    %221 = vmatpush1.msra.mxu0 0.0
    %222 = vmatprep.subr.mxu0 0.0
    %223 = vmatpush1.msra.mxu0 0.0
    %224 = vmatprep.subr.mxu0 0.0
    %225 = vmatpush1.msra.mxu0 0.0
    %226 = vmatprep.mubr.f32.mxu0 0.0
    %227 = vmatmul.mubr.f32.gmra.mrb[0].mxu0 %v151
    %v228 = vpop.f32.mrb[0].mxu0
    %v229 = vpop.f32.mrb[0].mxu0
    %v230 = vadd.f32 0.0, %v229
    %231 = vmatprep.mubr.f32.mxu0 0.0
    %232 = vmatmul.mubr.f32.gmra.mrb[0].mxu0 %v154
    %v233 = vpop.f32.mrb[0].mxu0
    %v234 = vpop.f32.mrb[0].mxu0
    %v235 = vadd.f32 0.0, %v234
    %236 = vmatprep.mubr.f32.mxu0 0.0
    %237 = vmatmul.mubr.f32.gmra.mrb[0].mxu0 %v157
    %v238 = vpop.f32.mrb[0].mxu0
    %v239 = vadd.f32 0.0, %v238
    %v240 = vpop.f32.mrb[0].mxu0
    %v241 = vadd.f32 0.0, %v240
    %242 = vmatprep.mubr.f32.mxu0 0.0
    %243 = vmatmul.mubr.f32.gmra.mrb[0].mxu0 %v160
    %v244 = vpop.f32.mrb[0].mxu0
    %v245 = vadd.f32 0.0, %v244
    %v246 = vpop.f32.mrb[0].mxu0
    %v247 = vadd.f32 0.0, %v246
    %248 = vdwg.mxu0
    %v249 = vand.u32 2147483647, %v239
    %v250 = vand.u32 2147483647, %v245
    %v251 = vand.u32 2147483647, %v230
    %v252 = vand.u32 2147483647, %v235
    %v253 = vadd.f32 %v249, %v251
    %v254 = vadd.f32 %v250, %v252
    %v255 = vand.u32 2147483647, %v241
    %v256 = vand.u32 2147483647, %v247
    %v257 = vadd.f32 %v253, %v255
    %v258 = vadd.f32 %v254, %v256
    %v259 = vld [vmem:[%s4] sm:$0xff]
    %v260 = vld [vmem:[%s4 + $0x8] sm:$0xff]
    %v261 = vld [vmem:[%s4 + $0x10] sm:$0xff]
    %v262 = vld [vmem:[%s4 + $0x18] sm:$0xff]
    %v263 = vld [vmem:[%s4 + $0x20] sm:$0xff]
    %v264 = vld [vmem:[%s4 + $0x28] sm:$0xff]
    %v265 = vld [vmem:[%s4 + $0x30] sm:$0xff]
    %v266 = vld [vmem:[%s4 + $0x38] sm:$0xff]
    %v267 = vld [vmem:[%s4 + $0x40] sm:$0xff]
    %v268 = vld [vmem:[%s4 + $0x48] sm:$0xff]
    %v269 = vld [vmem:[%s4 + $0x50] sm:$0xff]
    %v270 = vld [vmem:[%s4 + $0x58] sm:$0xff]
    %v271 = vld [vmem:[%s4 + $0x60] sm:$0xff]
    %v272 = vld [vmem:[%s4 + $0x68] sm:$0xff]
    %v273 = vld [vmem:[%s4 + $0x70] sm:$0xff]
    %v274 = vld [vmem:[%s4 + $0x78] sm:$0xff]
    %275 = vmatprep.subr.mxu0 0.0
    %276 = vmatpush1.msra.mxu0 %v259
    %277 = vmatprep.subr.mxu0 0.0
    %278 = vmatpush1.msra.mxu0 %v260
    %279 = vmatprep.subr.mxu0 0.0
    %280 = vmatpush1.msra.mxu0 %v261
    %281 = vmatprep.subr.mxu0 0.0
    %282 = vmatpush1.msra.mxu0 %v262
    %283 = vmatprep.subr.mxu0 0.0
    %284 = vmatpush1.msra.mxu0 %v263
    %285 = vmatprep.subr.mxu0 0.0
    %286 = vmatpush1.msra.mxu0 %v264
    %287 = vmatprep.subr.mxu0 0.0
    %288 = vmatpush1.msra.mxu0 %v265
    %289 = vmatprep.subr.mxu0 0.0
    %290 = vmatpush1.msra.mxu0 %v266
    %291 = vmatprep.subr.mxu0 0.0
    %292 = vmatpush1.msra.mxu0 %v267
    %293 = vmatprep.subr.mxu0 0.0
    %294 = vmatpush1.msra.mxu0 %v268
    %295 = vmatprep.subr.mxu0 0.0
    %296 = vmatpush1.msra.mxu0 %v269
    %297 = vmatprep.subr.mxu0 0.0
    %298 = vmatpush1.msra.mxu0 %v270
    %299 = vmatprep.subr.mxu0 0.0
    %300 = vmatpush1.msra.mxu0 %v271
    %301 = vmatprep.subr.mxu0 0.0
    %302 = vmatpush1.msra.mxu0 %v272
    %303 = vmatprep.subr.mxu0 0.0
    %304 = vmatpush1.msra.mxu0 %v273
    %305 = vmatprep.subr.mxu0 0.0
    %306 = vmatpush1.msra.mxu0 %v274
    %307 = vmatprep.subr.mxu0 0.0
    %308 = vmatpush1.msra.mxu0 0.0
    %309 = vmatprep.subr.mxu0 0.0
    %310 = vmatpush1.msra.mxu0 0.0
    %311 = vmatprep.subr.mxu0 0.0
    %312 = vmatpush1.msra.mxu0 0.0
    %313 = vmatprep.subr.mxu0 0.0
    %314 = vmatpush1.msra.mxu0 0.0
    %315 = vmatprep.subr.mxu0 0.0
    %316 = vmatpush1.msra.mxu0 0.0
    %317 = vmatprep.subr.mxu0 0.0
    %318 = vmatpush1.msra.mxu0 0.0
    %319 = vmatprep.subr.mxu0 0.0
    %320 = vmatpush1.msra.mxu0 0.0
    %321 = vmatprep.subr.mxu0 0.0
    %322 = vmatpush1.msra.mxu0 0.0
    %323 = vmatprep.subr.mxu0 0.0
    %324 = vmatpush1.msra.mxu0 0.0
    %325 = vmatprep.subr.mxu0 0.0
    %326 = vmatpush1.msra.mxu0 0.0
    %327 = vmatprep.subr.mxu0 0.0
    %328 = vmatpush1.msra.mxu0 0.0
    %329 = vmatprep.subr.mxu0 0.0
    %330 = vmatpush1.msra.mxu0 0.0
    %331 = vmatprep.subr.mxu0 0.0
    %332 = vmatpush1.msra.mxu0 0.0
    %333 = vmatprep.subr.mxu0 0.0
    %334 = vmatpush1.msra.mxu0 0.0
    %335 = vmatprep.subr.mxu0 0.0
    %336 = vmatpush1.msra.mxu0 0.0
    %337 = vmatprep.subr.mxu0 0.0
    %338 = vmatpush1.msra.mxu0 0.0
    %339 = vmatprep.mubr.f32.mxu0 0.0
    %340 = vmatmul.mubr.f32.gmra.mrb[0].mxu0 %v257
    %v341 = vpop.f32.mrb[0].mxu0
    %v342 = vadd.f32 0.0, %v341
    %v343 = vpop.f32.mrb[0].mxu0
    %344 = vmatprep.mubr.f32.mxu0 0.0
    %345 = vmatmul.mubr.f32.gmra.mrb[0].mxu0 %v258
    %v346 = vpop.f32.mrb[0].mxu0
    %v347 = vadd.f32 0.0, %v346
    %v348 = vpop.f32.mrb[0].mxu0
    %349 = vdwg.mxu0
    %v350 = vld [vmem:[%s3] sm:$0xff]
    %v351 = vld [vmem:[%s3 + $0x8] sm:$0xff]
    %v353 = vsel %vm149, %v350, 0
    %v356 = vsel %vm149, %v351, 0
    %358 = vmatprep.subr.mxu0 0.0
    %359 = vmatpush1.msra.mxu0 %v342
    %360 = vmatprep.subr.mxu0 0.0
    %361 = vmatpush1.msra.mxu0 %v347
    %362 = vmatprep.subr.mxu0 0.0
    %363 = vmatpush1.msra.mxu0 0.0
    %364 = vmatprep.subr.mxu0 0.0
    %365 = vmatpush1.msra.mxu0 0.0
    %366 = vmatprep.subr.mxu0 0.0
    %367 = vmatpush1.msra.mxu0 0.0
    %368 = vmatprep.subr.mxu0 0.0
    %369 = vmatpush1.msra.mxu0 0.0
    %370 = vmatprep.subr.mxu0 0.0
    %371 = vmatpush1.msra.mxu0 0.0
    %372 = vmatprep.subr.mxu0 0.0
    %373 = vmatpush1.msra.mxu0 0.0
    %374 = vmatprep.subr.mxu0 0.0
    %375 = vmatpush1.msra.mxu0 0.0
    %376 = vmatprep.subr.mxu0 0.0
    %377 = vmatpush1.msra.mxu0 0.0
    %378 = vmatprep.subr.mxu0 0.0
    %379 = vmatpush1.msra.mxu0 0.0
    %380 = vmatprep.subr.mxu0 0.0
    %381 = vmatpush1.msra.mxu0 0.0
    %382 = vmatprep.subr.mxu0 0.0
    %383 = vmatpush1.msra.mxu0 0.0
    %384 = vmatprep.subr.mxu0 0.0
    %385 = vmatpush1.msra.mxu0 0.0
    %386 = vmatprep.subr.mxu0 0.0
    %387 = vmatpush1.msra.mxu0 0.0
    %388 = vmatprep.subr.mxu0 0.0
    %389 = vmatpush1.msra.mxu0 0.0
    %390 = vmatprep.subr.mxu0 0.0
    %391 = vmatpush1.msra.mxu0 0.0
    %392 = vmatprep.subr.mxu0 0.0
    %393 = vmatpush1.msra.mxu0 0.0
    %394 = vmatprep.subr.mxu0 0.0
    %395 = vmatpush1.msra.mxu0 0.0
    %396 = vmatprep.subr.mxu0 0.0
    %397 = vmatpush1.msra.mxu0 0.0
    %398 = vmatprep.subr.mxu0 0.0
    %399 = vmatpush1.msra.mxu0 0.0
    %400 = vmatprep.subr.mxu0 0.0
    %401 = vmatpush1.msra.mxu0 0.0
    %402 = vmatprep.subr.mxu0 0.0
    %403 = vmatpush1.msra.mxu0 0.0
    %404 = vmatprep.subr.mxu0 0.0
    %405 = vmatpush1.msra.mxu0 0.0
    %406 = vmatprep.subr.mxu0 0.0
    %407 = vmatpush1.msra.mxu0 0.0
    %408 = vmatprep.subr.mxu0 0.0
    %409 = vmatpush1.msra.mxu0 0.0
    %410 = vmatprep.subr.mxu0 0.0
    %411 = vmatpush1.msra.mxu0 0.0
    %412 = vmatprep.subr.mxu0 0.0
    %413 = vmatpush1.msra.mxu0 0.0
    %414 = vmatprep.subr.mxu0 0.0
    %415 = vmatpush1.msra.mxu0 0.0
    %416 = vmatprep.subr.mxu0 0.0
    %417 = vmatpush1.msra.mxu0 0.0
    %418 = vmatprep.subr.mxu0 0.0
    %419 = vmatpush1.msra.mxu0 0.0
    %420 = vmatprep.subr.mxu0 0.0
    %421 = vmatpush1.msra.mxu0 0.0
    %422 = vmatprep.mubr.f32.mxu0 0.0
    %423 = vmatmul.mubr.f32.gmra.mrb[0].mxu0 %v353
    %v424 = vpop.f32.mrb[0].mxu0
    %v425 = vadd.f32 0.0, %v424
    %v426 = vpop.f32.mrb[0].mxu0
    %427 = vmatprep.mubr.f32.mxu0 0.0
    %428 = vmatmul.mubr.f32.gmra.mrb[0].mxu0 %v356
    %v429 = vpop.f32.mrb[0].mxu0
    %v430 = vadd.f32 0.0, %v429
    %v431 = vpop.f32.mrb[0].mxu0
    %432 = vdwg.mxu0
    %433 = vst [vmem:[%s5] sm:$0xff] %v425
    %434 = vst [vmem:[%s5 + $0x8] sm:$0xff] %v430
    // Predicated region
    $region26: #{wavelet_domain_feature.1} parent=1 // pred_check
      _
    $region27: #{wavelet_domain_feature.1} parent=1 // pred_check_branch
      %436 = sbr.rel (0) target = $region29
    $region28: #{wavelet_domain_feature.1} parent=1 // pred_region
      _
    $region29: #{wavelet_domain_feature.1} parent=1 // pred_fallthru
      _
    // Predicated region
    $region30: #{wavelet_domain_feature.1} parent=1 // pred_check
      _
    $region31: #{wavelet_domain_feature.1} parent=1 // pred_check_branch
      %438 = sbr.rel (0) target = $region33
    $region32: #{wavelet_domain_feature.1} parent=1 // pred_region
      _
    $region33: #{wavelet_domain_feature.1} parent=1 // pred_fallthru
      _
    %439 = vsyncpa [#allocation3], 1

</llo_original>
